<compile_context>
chip_gen: v5e
topology: v5e:2x2
jax: 0.10.0
libtpu: 0.0.40
codegen_flags: <defaults>
</compile_context>

<pallas_src>
import jax
import jax.numpy as jnp
from jax.experimental import pallas as pl
from jax.experimental.pallas import tpu as pltpu

_LANE = 128                    # TPU vreg lane width
_VMEM_LIMIT_BYTES = 40 << 20   # safe on v5e/v6e (128 MiB phys) and v7x (64 MiB phys)


def _device_kind() -> str:
    try:
        return jax.devices()[0].device_kind.lower()
    except Exception:
        return ""


def _tile_target_bytes(kind: str) -> int:
    """Per-tile VMEM budget (2 in + 2 out double buffers = 4x this)."""
    if "7" in kind:                      # v7x: ~3.2 TB/s HBM -> amortize 0.35us/step
        return 8 << 20
    if "v5" in kind:                     # v5e/v5p: ~820 GB/s, small tiles already fine
        return 2 << 20
    return 4 << 20                       # v6e default (~86% roofline measured)


def _num_tensorcores(kind: str) -> int:
    return 2 if "7" in kind else 1       # v7x has 2 TCs/chip; v5e/v6e have 1


def _sublane_multiple(dtype) -> int:
    """Native sublane tile: 8 rows for f32, 16 for bf16, 32 for int8/fp8."""
    return max(8, 32 // jnp.dtype(dtype).itemsize)


def _choose_layout(n: int, sub_mult: int):
    """Lane-dense 2-D slab (rows, lane_w, padded_n) for the flattened tensor."""
    for cand in (2048, 1024, 512, 256, _LANE):
        if n % cand == 0:
            return n // cand, cand, n
    # Not 128-divisible: pad so every store is a full unmasked vst and rows is
    # a multiple of the native sublane tile; padding is sliced off afterwards.
    chunk = sub_mult * _LANE
    padded = ((n + chunk - 1) // chunk) * chunk
    return padded // _LANE, _LANE, padded


def _choose_tile_rows(rows, lane_w, dtype_bytes, sub_mult, target_bytes, num_tc):
    cap = (target_bytes // max(1, lane_w * dtype_bytes)) // sub_mult * sub_mult
    cap = max(sub_mult, cap)
    if rows <= cap:
        # Whole tensor fits one block.  On multi-TC chips split into >=2 blocks
        # (when legal) so the "parallel" grid axis gives both cores work.
        if num_tc >= 2 and rows >= 2 * sub_mult:
            half = -(-rows // 2)
            return ((half + sub_mult - 1) // sub_mult) * sub_mult
        return rows                          # full-extent block (always legal)
    # Prefer a tile that divides rows evenly -> no ragged/masked final block,
    # but never shrink below half the budget just to find a divisor.
    for t in range(cap, max(sub_mult, cap // 2) - 1, -sub_mult):
        if rows % t == 0:
            return t
    return cap


def _identity_scale_kernel(x_ref, o_ref):
    # Elementwise hot path of the scale controller.  Base class: identity.
    # A concrete subclass would replace this with e.g. softmax / L_p-normalize
    # / relu along the scaled axis, or a learnable per-channel scale.
    o_ref[...] = x_ref[...]


def _identity_copy_pallas(x: jax.Array) -> jax.Array:
    orig_shape = x.shape
    n = x.size
    dtype_bytes = jnp.dtype(x.dtype).itemsize
    sub_mult = _sublane_multiple(x.dtype)
    kind = _device_kind()

    rows, lane_w, padded_n = _choose_layout(n, sub_mult)
    x_flat = x.reshape(-1)
    if padded_n != n:
        x_flat = jnp.pad(x_flat, (0, padded_n - n))   # lane-dense pad (sliced off below)
    x2d = x_flat.reshape(rows, lane_w)

    tile_r = _choose_tile_rows(rows, lane_w, dtype_bytes, sub_mult,
                               _tile_target_bytes(kind), _num_tensorcores(kind))
    grid_r = pl.cdiv(rows, tile_r)

    out = pl.pallas_call(
        _identity_scale_kernel,
        out_shape=jax.ShapeDtypeStruct((rows, lane_w), x2d.dtype),
        grid=(grid_r,),
        in_specs=[pl.BlockSpec((tile_r, lane_w), lambda i: (i, 0))],
        out_specs=pl.BlockSpec((tile_r, lane_w), lambda i: (i, 0)),
        compiler_params=pltpu.CompilerParams(
            dimension_semantics=("parallel",),
            vmem_limit_bytes=_VMEM_LIMIT_BYTES,
        ),
        cost_estimate=pl.CostEstimate(
            flops=0, transcendentals=0,
            bytes_accessed=2 * x2d.size * dtype_bytes),
    )(x2d)

    out_flat = out.reshape(-1)
    if padded_n != n:
        out_flat = out_flat[:n]
    return out_flat.reshape(orig_shape)


def scale_controller_base(x: jax.Array, dim: int = 0, p: int = 1,
                          *, run_kernel: bool = False) -> jax.Array:
    """Pallas port of ScaleControllerBase.forward (identity pass-through).

    `dim` and `p` are accepted for signature parity with the PyTorch module but
    are unused (the abstract base class defines no concrete scaling rule).
    Default path returns x directly -- zero HBM traffic -- per perf review; the
    tiled/pipelined identity kernel (run_kernel=True) is the template a
    concrete subclass would specialize with real elementwise work.
    """
    del dim, p  # unused by the abstract base class
    if not run_kernel or x.size == 0:
        return x
    return _identity_copy_pallas(x)


if __name__ == "__main__":
    key = jax.random.PRNGKey(0)
    # Small shapes consistent with a sequence-labeling scale controller:
    # batch=2, seq=8, hidden=32.
    x = jax.random.normal(key, (2, 8, 32), dtype=jnp.float32)

    # Base-class fast path: no kernel launched, x passes through untouched.
    y_fast = scale_controller_base(x, dim=-1, p=2)
    assert y_fast.shape == x.shape and y_fast.dtype == x.dtype
    assert bool(jnp.all(y_fast == x))

    # Kernel-template path (what a subclass would fill in) -- run it once.
    y = scale_controller_base(x, dim=-1, p=2, run_kernel=True)
    y = jax.block_until_ready(y)

    # Base-class semantics: output must equal input exactly.
    assert y.shape == x.shape and y.dtype == x.dtype
    assert bool(jnp.all(y == x))

    print("KERNEL_OK")
</pallas_src>

<mosaic_0001>
module attributes {stable_mosaic.version = 11 : i64} {
  func.func @_identity_scale_kernel(%arg0: i32, %arg1: memref<1x512xf32, #tpu.memory_space<vmem>>, %arg2: memref<1x512xf32, #tpu.memory_space<vmem>>) attributes {dimension_semantics = [#tpu.dimension_semantics<parallel>], iteration_bounds = array<i64: 1>, scalar_prefetch = 0 : i64, scratch_operands = 0 : i64, tpu.core_type = #tpu.core_type<tc>, window_params = [{transform_indices = @transform_0, window_bounds = array<i64: 1, 512>}, {transform_indices = @transform_1, window_bounds = array<i64: 1, 512>}]} {
    %c0 = arith.constant 0 : index
    %c0_0 = arith.constant 0 : index
    %0 = vector.load %arg1[%c0, %c0_0] : memref<1x512xf32, #tpu.memory_space<vmem>>, vector<1x512xf32>
    %c0_1 = arith.constant 0 : index
    %c0_2 = arith.constant 0 : index
    %1 = vector.load %arg2[%c0_1, %c0_2] : memref<1x512xf32, #tpu.memory_space<vmem>>, vector<1x512xf32>
    tpu.vector_store %arg2[%c0_1, %c0_2], %0 {strides = array<i32>} : memref<1x512xf32, #tpu.memory_space<vmem>>, vector<1x512xf32>,
    return
  }
  func.func @transform_0(%arg0: i32) -> (i32, i32) {
    %c0_i32 = arith.constant 0 : i32
    %c0_i32_0 = arith.constant 0 : i32
    return %arg0, %c0_i32 : i32, i32
  }
  func.func @transform_1(%arg0: i32) -> (i32, i32) {
    %c0_i32 = arith.constant 0 : i32
    %c0_i32_0 = arith.constant 0 : i32
    return %arg0, %c0_i32 : i32, i32
  }
}

</mosaic_0001>

<llo_original>
// kernel: tpu_custom_call.1
$region0: #{tpu_custom_call.1}
  #allocation0 [shape = 'u32[]', space=smem, size = 0x4, offset = 0x4, fixed_abs, tag = 'smem constant byte address 0x4 - core index']
  #allocation1 [shape = 'u32[72,128]{1,0:T(1,128)}', space=vmem, size = 0x9000, scoped, tag = 'internal scratch']
  %s0 = inlined_call_operand.hbm [shape: f32[1,512], index: 0, kind: input, shape index: {}]
  %s1 = inlined_call_operand.hbm [shape: f32[1,512], index: 1, kind: output, shape index: {}]
  %s2 = sld [smem:[#allocation0]]
  $region18: #{tpu_custom_call.1} parent=0
    _
  %s4 = ssub.s32 1, %s2
  %s5 = scalar_select 0, %s4, %s2
  $region1: #{tpu_custom_call.1} parent=0
    #allocation2 [shape = 'u8[2048]{0}', space=vmem, size = 0x800, scoped, tag = 'input window, operand 0, single buffered']
    #allocation3 [shape = 's32[1]{0}', space=sflag, size = 0x4, scoped, tag = 'scoped memory for tpu_custom_call.1']
    #allocation4 [shape = 's32[1]{0}', space=sflag, size = 0x4, scoped, tag = 'scoped memory for tpu_custom_call.1']
    #allocation5 [shape = 'u8[2048]{0}', space=vmem, size = 0x800, scoped, tag = 'output window, operand 0, single buffered']
    %6 = vsyncpa [#allocation3], 0
    %7 = vsyncpa [#allocation4], 0
    // Predicated region
    $region2: #{tpu_custom_call.1} parent=1 // pred_check
      _
    $region3: #{tpu_custom_call.1} parent=1 // pred_check_branch
      %9 = sbr.rel (0) target = $region5
    $region4: #{tpu_custom_call.1} parent=1 // pred_region
      %11 = vsyncadd [#allocation3], 0
      %s13 = sshll.u32 %s0, 4
      %s14 = int_to_ptr.hbm [resolvable:$true] %s13
      %s15 = sshll.u32 [#allocation2], 4
      %s16 = int_to_ptr.vmem [resolvable:$true] %s15
      %18 = dma.hbm_to_vmem [thread:$0]  %s14, 64, %s16, [#allocation3]
    $region5: #{tpu_custom_call.1} parent=1 // pred_fallthru
      _
    // Predicated region
    $region6: #{tpu_custom_call.1} parent=1 // pred_check
      _
    $region7: #{tpu_custom_call.1} parent=1 // pred_check_branch
      %20 = sbr.rel (0) target = $region9
    $region8: #{tpu_custom_call.1} parent=1 // pred_region
      %22 = dma.done [#allocation3], 64
    $region9: #{tpu_custom_call.1} parent=1 // pred_fallthru
      _
    %v23 = vld [vmem:[#allocation2] sm:$0xf]
    %v24 = vlaneseq
    %vm25 = vcmp.ge.s32.totalorder %v24, 0
    %vm26 = vcmp.lt.s32.totalorder %v24, 512
    %vm27 = vmand %vm25, %vm26
    %28 = vst.msk [vmem:[#allocation5] sm:$0xf] %vm27, %v23
    // Predicated region
    $region10: #{tpu_custom_call.1} parent=1 // pred_check
      _
    $region11: #{tpu_custom_call.1} parent=1 // pred_check_branch
      %30 = sbr.rel (0) target = $region13
    $region12: #{tpu_custom_call.1} parent=1 // pred_region
      %32 = vsyncadd [#allocation4], 0
      %s34 = sshll.u32 [#allocation5], 4
      %s35 = int_to_ptr.vmem [resolvable:$true] %s34
      %s36 = sshll.u32 %s1, 4
      %s37 = int_to_ptr.hbm [resolvable:$true] %s36
      %39 = dma.vmem_to_hbm [thread:$0]  %s35, 64, %s37, [#allocation4]
    $region13: #{tpu_custom_call.1} parent=1 // pred_fallthru
      _
    // Predicated region
    $region14: #{tpu_custom_call.1} parent=1 // pred_check
      _
    $region15: #{tpu_custom_call.1} parent=1 // pred_check_branch
      %41 = sbr.rel (0) target = $region17
    $region16: #{tpu_custom_call.1} parent=1 // pred_region
      %43 = dma.done [#allocation4], 64
    $region17: #{tpu_custom_call.1} parent=1 // pred_fallthru
      _
    %44 = vsyncpa [#allocation3], 1
    %45 = vsyncpa [#allocation4], 1

</llo_original>
